<compile_context>
chip_gen: v6e
topology: v6e:2x2x1
jax: 0.10.0
libtpu: 0.0.40
codegen_flags: <defaults>
</compile_context>

<pallas_src>
import jax
import jax.numpy as jnp
from jax import lax
from jax.experimental import pallas as pl
from jax.experimental.pallas import tpu as pltpu


_LANE = 128                               # lane width: last-dim block sizes must be
                                          # multiples of this (or the full dim)
_DEFAULT_BLOCK_BYTES = 8 * 1024 * 1024    # ~8 MiB per input block (review: 2 -> 8 MiB)


def _round_down_128(n):
    return (n // _LANE) * _LANE


def _round_up_128(n):
    return ((n + _LANE - 1) // _LANE) * _LANE


def _choose_tiles(R, HW, itemsize, max_block_bytes):
    """Pick (rows_tile, hw_tile) obeying TPU tiling rules:
       * rows_tile is R (full) or a multiple of 128 (lane dim of the output
         block and sublane dim of the input block),
       * hw_tile is HW (full) or a multiple of 128,
       * rows_tile * hw_tile * itemsize <= max_block_bytes whenever possible."""
    total_bytes = R * HW * itemsize

    # Case 1: whole problem fits a single block.
    if total_bytes <= max_block_bytes:
        rows_tile = R
        if R >= 2 * _LANE:
            # Split rows into ~2 tiles so the "parallel" axis can shard across
            # both TensorCores of a v7x megacore (never emit grid=(1,) here).
            cand = _round_up_128(pl.cdiv(R, 2))
            if cand < R:
                rows_tile = cand
        return rows_tile, HW

    row_bytes = HW * itemsize
    # Case 2: a 128-row slab at full H*W fits the budget -> stream row tiles,
    # single reduction step per row tile.
    if _LANE * row_bytes <= max_block_bytes:
        rows_tile = _round_down_128(max_block_bytes // row_bytes)
        return rows_tile, HW

    # Case 3: huge H*W (e.g. 256x256 f32) -> tile the reduction axis too so we
    # stay inside the VMEM budget and keep DMA/compute overlap.
    rows_tile = R if R <= _LANE else _LANE
    hw_tile = _round_down_128(max_block_bytes // (rows_tile * itemsize))
    hw_tile = max(_LANE, hw_tile)
    if hw_tile >= HW:
        hw_tile = HW
    return rows_tile, hw_tile


def _make_kernel(hw_total, hw_tile, fill_value):
    needs_hw_mask = (hw_total % hw_tile) != 0

    def kernel(x_ref, o_ref):
        # x_ref: (rows_tile, hw_tile) tile in VMEM; o_ref: (1, rows_tile),
        # resident across the reduction (k) axis -> running-max accumulator.
        k = pl.program_id(1)
        x = x_ref[...]
        if needs_hw_mask:
            # Last H*W block runs past the array; replace out-of-bounds lanes
            # with the max identity so garbage can't contaminate the result.
            col = lax.broadcasted_iota(jnp.int32, x.shape, dimension=1)
            valid = (k * hw_tile + col) < hw_total
            x = jnp.where(valid, x, jnp.asarray(fill_value, x.dtype))

        tile_max = jnp.max(x, axis=-1)[None, :]          # (1, rows_tile), lane-dense

        @pl.when(k == 0)
        def _():
            o_ref[...] = tile_max

        @pl.when(k != 0)
        def _():
            o_ref[...] = jnp.maximum(o_ref[...], tile_max)

    return kernel


def global_max_pool2d(x, *, max_block_bytes=_DEFAULT_BLOCK_BYTES):
    """x: (N, C, H, W). Returns (N, C, 1, 1) = max over spatial dims
    (== F.max_pool2d(x, kernel_size=(H, W)))."""
    N, C, H, W = x.shape
    R, HW = N * C, H * W
    itemsize = x.dtype.itemsize

    # Wrapper-side layout plumbing: lane-dense 2-D view of the problem.
    x2d = x.reshape(R, HW)

    rows_tile, hw_tile = _choose_tiles(R, HW, itemsize, max_block_bytes)
    grid = (pl.cdiv(R, rows_tile), pl.cdiv(HW, hw_tile))

    if jnp.issubdtype(x.dtype, jnp.floating):
        fill = -jnp.inf
    elif jnp.issubdtype(x.dtype, jnp.integer):
        fill = jnp.iinfo(x.dtype).min
    else:
        fill = False

    block_bytes = rows_tile * hw_tile * itemsize
    # 2 double-buffered input blocks + tiny output + Mosaic internal scratch.
    # With the 8 MiB block cap this stays <= 32 MiB, safe for v5e/v6e/v7x.
    vmem_limit = int(max(32 << 20, 2 * block_bytes + (8 << 20)))

    out_row = pl.pallas_call(
        _make_kernel(HW, hw_tile, fill),
        out_shape=jax.ShapeDtypeStruct((1, R), x.dtype),
        grid=grid,
        in_specs=[pl.BlockSpec((rows_tile, hw_tile), lambda i, k: (i, k))],
        out_specs=pl.BlockSpec((1, rows_tile), lambda i, k: (0, i)),
        compiler_params=pltpu.CompilerParams(
            # Rows are independent ("parallel" -> megacore sharding on v7x);
            # H*W is the reduction axis, placed last and marked "arbitrary".
            dimension_semantics=("parallel", "arbitrary"),
            vmem_limit_bytes=vmem_limit,
        ),
        cost_estimate=pl.CostEstimate(
            flops=R * HW,
            transcendentals=0,
            bytes_accessed=R * HW * itemsize + R * itemsize,
        ),
    )(x2d)

    # Glue: match F.max_pool2d(kernel_size=(H, W)) output shape (N, C, 1, 1).
    return out_row.reshape(N, C, 1, 1)


def global_max_pool2d_ref(x):
    """Pure-JAX reference."""
    return jnp.max(x, axis=(2, 3), keepdims=True)


if __name__ == "__main__":
    key = jax.random.PRNGKey(0)

    # Primary shape from the module spec.
    N, C, H, W = 2, 4, 16, 16
    x = jax.random.normal(key, (N, C, H, W), dtype=jnp.float32)
    out = jax.block_until_ready(global_max_pool2d(x))
    ref = jax.block_until_ready(global_max_pool2d_ref(x))
    assert out.shape == (N, C, 1, 1), out.shape
    assert jnp.array_equal(out, ref), float(jnp.max(jnp.abs(out - ref)))

    # Exercise the HW-tiled running-max path (non-divisible H*W -> masking).
    k2 = jax.random.PRNGKey(0)
    x2 = jax.random.normal(k2, (2, 4, 37, 53), dtype=jnp.float32)
    out2 = jax.block_until_ready(global_max_pool2d(x2, max_block_bytes=32 * 1024))
    ref2 = jax.block_until_ready(global_max_pool2d_ref(x2))
    assert jnp.array_equal(out2, ref2)

    # Exercise the megacore row-split path (R >= 256, whole problem fits).
    k3 = jax.random.PRNGKey(0)
    x3 = jax.random.normal(k3, (4, 64, 8, 8), dtype=jnp.float32)
    out3 = jax.block_until_ready(global_max_pool2d(x3))
    ref3 = jax.block_until_ready(global_max_pool2d_ref(x3))
    assert jnp.array_equal(out3, ref3)

    print("KERNEL_OK")
</pallas_src>

<mosaic_0001>
module attributes {stable_mosaic.version = 11 : i64} {
  func.func @kernel(%arg0: i32, %arg1: i32, %arg2: memref<8x256xf32, #tpu.memory_space<vmem>>, %arg3: memref<1x8xf32, #tpu.memory_space<vmem>>) attributes {dimension_semantics = [#tpu.dimension_semantics<parallel>, #tpu.dimension_semantics<arbitrary>], iteration_bounds = array<i64: 1, 1>, scalar_prefetch = 0 : i64, scratch_operands = 0 : i64, tpu.core_type = #tpu.core_type<tc>, window_params = [{transform_indices = @transform_0, window_bounds = array<i64: 8, 256>}, {transform_indices = @transform_1, window_bounds = array<i64: 1, 8>}]} {
    %c0 = arith.constant 0 : index
    %c0_0 = arith.constant 0 : index
    %0 = vector.load %arg2[%c0, %c0_0] : memref<8x256xf32, #tpu.memory_space<vmem>>, vector<8x256xf32>
    %cst = arith.constant dense<0xFF800000> : vector<8xf32>
    %1 = vector.multi_reduction <maximumf>, %0, %cst [1] : vector<8x256xf32> to vector<8xf32>
    %2 = vector.shape_cast %1 : vector<8xf32> to vector<1x8xf32>
    %c0_i32 = arith.constant 0 : i32
    %3 = arith.cmpi eq, %arg1, %c0_i32 : i32
    %4 = arith.extui %3 : i1 to i32
    %c0_i32_1 = arith.constant 0 : i32
    %5 = arith.cmpi ne, %4, %c0_i32_1 : i32
    scf.if %5 {
      %c0_4 = arith.constant 0 : index
      %c0_5 = arith.constant 0 : index
      %9 = vector.load %arg3[%c0_4, %c0_5] : memref<1x8xf32, #tpu.memory_space<vmem>>, vector<1x8xf32>
      tpu.vector_store %arg3[%c0_4, %c0_5], %2 {strides = array<i32>} : memref<1x8xf32, #tpu.memory_space<vmem>>, vector<1x8xf32>,
    } else {
    }
    %c0_i32_2 = arith.constant 0 : i32
    %6 = arith.cmpi ne, %arg1, %c0_i32_2 : i32
    %7 = arith.extui %6 : i1 to i32
    %c0_i32_3 = arith.constant 0 : i32
    %8 = arith.cmpi ne, %7, %c0_i32_3 : i32
    scf.if %8 {
      %c0_4 = arith.constant 0 : index
      %c0_5 = arith.constant 0 : index
      %9 = vector.load %arg3[%c0_4, %c0_5] : memref<1x8xf32, #tpu.memory_space<vmem>>, vector<1x8xf32>
      %10 = arith.maximumf %9, %2 : vector<1x8xf32>
      %c0_6 = arith.constant 0 : index
      %c0_7 = arith.constant 0 : index
      %11 = vector.load %arg3[%c0_6, %c0_7] : memref<1x8xf32, #tpu.memory_space<vmem>>, vector<1x8xf32>
      tpu.vector_store %arg3[%c0_6, %c0_7], %10 {strides = array<i32>} : memref<1x8xf32, #tpu.memory_space<vmem>>, vector<1x8xf32>,
    } else {
    }
    return
  }
  func.func @transform_0(%arg0: i32, %arg1: i32) -> (i32, i32) {
    %c0_i32 = arith.constant 0 : i32
    return %arg0, %arg1 : i32, i32
  }
  func.func @transform_1(%arg0: i32, %arg1: i32) -> (i32, i32) {
    %c0_i32 = arith.constant 0 : i32
    %c0_i32_0 = arith.constant 0 : i32
    return %c0_i32, %arg0 : i32, i32
  }
}

</mosaic_0001>

<llo_original>
// kernel: tpu_custom_call.1
$region0: #{tpu_custom_call.1}
  #allocation0 [shape = 'u32[]', space=smem, size = 0x4, offset = 0x4, fixed_abs, tag = 'smem constant byte address 0x4 - core index']
  #allocation1 [shape = 'u32[144,128]{1,0:T(1,128)}', space=vmem, size = 0x12000, scoped, tag = 'internal scratch']
  %s0 = inlined_call_operand.hbm [shape: f32[8,256], index: 0, kind: input, shape index: {}]
  %s1 = inlined_call_operand.hbm [shape: f32[1,8], index: 1, kind: output, shape index: {}]
  %s2 = sld [smem:[#allocation0]]
  $region26: #{tpu_custom_call.1} parent=0
    _
  %s4 = ssub.s32 1, %s2
  %s5 = scalar_select 0, %s4, %s2
  $region1: #{tpu_custom_call.1} parent=0
    #allocation2 [shape = 'u8[8192]{0}', space=vmem, size = 0x2000, scoped, tag = 'input window, operand 0, single buffered']
    #allocation3 [shape = 's32[1]{0}', space=sflag, size = 0x4, scoped, tag = 'scoped memory for tpu_custom_call.1']
    #allocation4 [shape = 's32[1]{0}', space=sflag, size = 0x4, scoped, tag = 'scoped memory for tpu_custom_call.1']
    #allocation5 [shape = 'u8[512]{0}', space=vmem, size = 0x400, scoped, tag = 'output window, operand 0, single buffered']
    %6 = vsyncpa [#allocation3], 0
    %7 = vsyncpa [#allocation4], 0
    // Predicated region
    $region2: #{tpu_custom_call.1} parent=1 // pred_check
      _
    $region3: #{tpu_custom_call.1} parent=1 // pred_check_branch
      %9 = sbr.rel (0) target = $region5
    $region4: #{tpu_custom_call.1} parent=1 // pred_region
      %s11 = ssub.s32 256, 256
      %12 = vsyncadd [#allocation3], %s11
      %s14 = sshll.u32 [#allocation2], 4
      %s15 = int_to_ptr.vmem [resolvable:$true] %s14
      %17 = dma.hbm_to_vmem [thread:$0]  %s0, 256, %s15, [#allocation3]
    $region5: #{tpu_custom_call.1} parent=1 // pred_fallthru
      _
    // Predicated region
    $region6: #{tpu_custom_call.1} parent=1 // pred_check
      _
    $region7: #{tpu_custom_call.1} parent=1 // pred_check_branch
      %19 = sbr.rel (0) target = $region9
    $region8: #{tpu_custom_call.1} parent=1 // pred_region
      %20 = dma.done [#allocation3], 256
    $region9: #{tpu_custom_call.1} parent=1 // pred_fallthru
      _
    %v21 = vld [vmem:[#allocation2] sm:$0xff]
    %v22 = vld [vmem:[#allocation2 + $0x8] sm:$0xff]
    %v23 = vmax.f32 %v21, %v22
    %24 = vmax.xlane.f32.xlu0 %v23
    %v25 = vpop.xlane.xlu0 %24
    %p26 = scmp.eq.s32.totalorder 0, 0
    // Predicated region
    $region10: #{tpu_custom_call.1} parent=1 // pred_check
      %p27 = pneg %p26
    $region11: #{tpu_custom_call.1} parent=1 // pred_check_branch
      %29 = sbr.rel (%p27) target = $region13
    $region12: #{tpu_custom_call.1} parent=1 // pred_region
      %v31 = vlaneseq
      %v32 = vand.u32 %v31, 127
      %v33 = vlaneseq
      %v34 = vshrl.u32 %v33, 7
      %v35 = vsub.s32 %v32, %v34
      %v36 = vrot.slane %v25, %v35
      %vm38 = vcmask 57344
      %39 = vst.msk [vmem:[#allocation5] sm:$0x1] %vm38, %v36
    $region13: #{tpu_custom_call.1} parent=1 // pred_fallthru
      _
    %p40 = scmp.ne.s32.totalorder 0, 0
    // Predicated region
    $region14: #{tpu_custom_call.1} parent=1 // pred_check
      %p41 = pneg %p40
    $region15: #{tpu_custom_call.1} parent=1 // pred_check_branch
      %43 = sbr.rel (%p41) target = $region17
    $region16: #{tpu_custom_call.1} parent=1 // pred_region
      %v44 = vld [vmem:[#allocation5] sm:$0x1]
      %v46 = vlaneseq
      %v47 = vshrl.u32 %v46, 7
      %v48 = vsub.s32 0, %v47
      %v49 = vrot.slane %v25, %v48
      %v50 = vlaneseq
      %v51 = vshrl.u32 %v50, 7
      %v52 = vsub.s32 1, %v51
      %v53 = vrot.slane %v25, %v52
      %v54 = vlaneseq
      %v55 = vshrl.u32 %v54, 7
      %v56 = vsub.s32 2, %v55
      %v57 = vrot.slane %v25, %v56
      %v58 = vlaneseq
      %v59 = vshrl.u32 %v58, 7
      %v60 = vsub.s32 3, %v59
      %v61 = vrot.slane %v25, %v60
      %v62 = vlaneseq
      %v63 = vshrl.u32 %v62, 7
      %v64 = vsub.s32 4, %v63
      %v65 = vrot.slane %v25, %v64
      %v66 = vlaneseq
      %v67 = vshrl.u32 %v66, 7
      %v68 = vsub.s32 5, %v67
      %v69 = vrot.slane %v25, %v68
      %v70 = vlaneseq
      %v71 = vshrl.u32 %v70, 7
      %v72 = vsub.s32 6, %v71
      %v73 = vrot.slane %v25, %v72
      %v74 = vlaneseq
      %v75 = vshrl.u32 %v74, 7
      %v76 = vsub.s32 7, %v75
      %v77 = vrot.slane %v25, %v76
      %v78 = vcombine.low %v49, %v53
      %v79 = vcombine.low %v57, %v61
      %v80 = vcombine.low %v65, %v69
      %v81 = vcombine.low %v73, %v77
      %v83 = vunpack.c.l.s4 1966171168
      %v84 = vunpack.c.0.s8 %v83
      %v85 = vlaneseq
      %v86 = vshrl.u32 %v85, 7
      %v87 = vsub.s32 %v84, %v86
      %v88 = vrot.slane %v78, %v87
      %v90 = vunpack.c.l.s4 1966171168
      %v91 = vunpack.c.0.s8 %v90
      %v92 = vlaneseq
      %v93 = vshrl.u32 %v92, 7
      %v94 = vsub.s32 %v91, %v93
      %v95 = vrot.slane %v79, %v94
      %v97 = vunpack.c.l.s4 1966171168
      %v98 = vunpack.c.0.s8 %v97
      %v99 = vlaneseq
      %v100 = vshrl.u32 %v99, 7
      %v101 = vsub.s32 %v98, %v100
      %v102 = vrot.slane %v80, %v101
      %v104 = vunpack.c.l.s4 1966171168
      %v105 = vunpack.c.0.s8 %v104
      %v106 = vlaneseq
      %v107 = vshrl.u32 %v106, 7
      %v108 = vsub.s32 %v105, %v107
      %v109 = vrot.slane %v81, %v108
      %v110 = vcombine.low %v88, %v95
      %v111 = vcombine.low %v102, %v109
      %v113 = vunpack.c.l.s4 1966171168
      %v114 = vunpack.c.0.s8 %v113
      %v115 = vlaneseq
      %v116 = vshrl.u32 %v115, 7
      %v117 = vsub.s32 %v114, %v116
      %v118 = vrot.slane %v110, %v117
      %v120 = vunpack.c.l.s4 1966171168
      %v121 = vunpack.c.0.s8 %v120
      %v122 = vlaneseq
      %v123 = vshrl.u32 %v122, 7
      %v124 = vsub.s32 %v121, %v123
      %v125 = vrot.slane %v111, %v124
      %v126 = vcombine.low %v118, %v125
      %127 = vset.pattern.permute.xlu0 0
      %128 = vperm.xlu0 %127, %v126
      %v129 = vpop.permute.xlu0 %128
      %v130 = vlaneseq
      %v131 = vand.u32 %v130, 127
      %v132 = vlaneseq
      %v133 = vshrl.u32 %v132, 7
      %v134 = vsub.s32 %v131, %v133
      %v135 = vrot.slane %v129, %v134
      %v137 = vunpack.c.l.s4 1966171168
      %v138 = vunpack.c.0.s8 %v137
      %v139 = vlaneseq
      %v140 = vshrl.u32 %v139, 7
      %v141 = vsub.s32 %v138, %v140
      %v142 = vrot.slane %v135, %v141
      %v144 = vunpack.c.l.s4 1966171168
      %v145 = vunpack.c.0.s8 %v144
      %v146 = vlaneseq
      %v147 = vshrl.u32 %v146, 7
      %v148 = vsub.s32 %v145, %v147
      %v149 = vrot.slane %v142, %v148
      %v151 = vmax.f32 %v44, %v149
      %vm152 = vcmask 57344
      %153 = vst.msk [vmem:[#allocation5] sm:$0x1] %vm152, %v151
    $region17: #{tpu_custom_call.1} parent=1 // pred_fallthru
      _
    // Predicated region
    $region18: #{tpu_custom_call.1} parent=1 // pred_check
      _
    $region19: #{tpu_custom_call.1} parent=1 // pred_check_branch
      %155 = sbr.rel (0) target = $region21
    $region20: #{tpu_custom_call.1} parent=1 // pred_region
      %s157 = ssub.s32 16, 16
      %158 = vsyncadd [#allocation4], %s157
      %s160 = sshll.u32 [#allocation5], 4
      %s161 = int_to_ptr.vmem [resolvable:$true] %s160
      %163 = dma.vmem_to_hbm [thread:$0]  %s161, 16, %s1, [#allocation4]
    $region21: #{tpu_custom_call.1} parent=1 // pred_fallthru
      _
    // Predicated region
    $region22: #{tpu_custom_call.1} parent=1 // pred_check
      _
    $region23: #{tpu_custom_call.1} parent=1 // pred_check_branch
      %165 = sbr.rel (0) target = $region25
    $region24: #{tpu_custom_call.1} parent=1 // pred_region
      %166 = dma.done [#allocation4], 16
    $region25: #{tpu_custom_call.1} parent=1 // pred_fallthru
      _
    %167 = vsyncpa [#allocation3], 1
    %168 = vsyncpa [#allocation4], 1

</llo_original>
